<compile_context>
chip_gen: v6e
topology: v6e:2x2x1
jax: 0.10.0
libtpu: 0.0.40
codegen_flags: <defaults>
</compile_context>

<pallas_src>
import jax
import jax.numpy as jnp
from jax.experimental import pallas as pl
from jax.experimental.pallas import tpu as pltpu

LANE = 128  # output lane padding for dense stores


# ----------------------------- Pallas kernel ------------------------------ #
def clip_memes_kernel(
    tok_emb_ref,    # (TB, S, E)   bf16 token embeddings
    mask_ref,       # (TB, S)      f32 pre-normalized attention mask
    img_ref,        # (TB, Dp)     bf16 mean-pooled image features
    w_text_ref,     # (E, H)       bf16 text projection
    w_img_ref,      # (Dp, H)      bf16 image projection
    w_cls_t_ref,    # (H, CPAD)    bf16 classifier half acting on text feats
    w_cls_i_ref,    # (H, CPAD)    bf16 classifier half acting on image feats
    b_cls_ref,      # (1, CPAD)    f32 classifier bias (lane-padded)
    out_ref,        # (TB, CPAD)   f32 logits (lane-padded)
):
    # --- text tower (simplified get_text_features):
    # masked mean pool (mask already normalized in wrapper) + projection.
    tok = tok_emb_ref[...].astype(jnp.float32)                    # (TB, S, E)
    maskn = mask_ref[...]                                         # (TB, S)
    text_pooled = jnp.sum(tok * maskn[:, :, None], axis=1)        # (TB, E) f32
    text_feat = jnp.dot(text_pooled.astype(jnp.bfloat16), w_text_ref[...],
                        preferred_element_type=jnp.float32)       # (TB, H) f32

    # --- image tower (simplified get_image_features): projection of pooled img
    img_feat = jnp.dot(img_ref[...], w_img_ref[...],
                       preferred_element_type=jnp.float32)        # (TB, H) f32

    # --- classifier on cat([text_feat, image_feat], dim=1):
    #     cat(t, i) @ W.T + b  ==  t @ W[:, :H].T + i @ W[:, H:].T + b
    logits = (
        jnp.dot(text_feat.astype(jnp.bfloat16), w_cls_t_ref[...],
                preferred_element_type=jnp.float32)
        + jnp.dot(img_feat.astype(jnp.bfloat16), w_cls_i_ref[...],
                  preferred_element_type=jnp.float32)
        + b_cls_ref[...]
    )
    out_ref[...] = logits                                         # lane-dense store


# ------------------------------- wrapper ----------------------------------- #
def clip_memes_forward(input_ids, attention_mask, image_tensor, params):
    """input_ids: (B, S) int32; attention_mask: (B, S); image_tensor: (B, 3, H, W)."""
    B, S = input_ids.shape
    _, C_in, H_img, W_img = image_tensor.shape
    p = params["patch_size"]
    E = params["tok_emb_table"].shape[1]
    H = params["w_text"].shape[1]
    Dp = params["w_img"].shape[0]
    CPAD = params["w_cls_t"].shape[1]
    num_classes = params["num_classes"]

    # Glue: embedding gather (data-dependent lookup kept in plain JAX), bf16.
    tok_emb = params["tok_emb_table"][input_ids]                   # (B, S, E) bf16

    # Glue: pre-normalize the mask so the kernel does a plain weighted sum.
    mask = attention_mask.astype(jnp.float32)
    mask_norm = mask / jnp.maximum(jnp.sum(mask, axis=1, keepdims=True), 1.0)

    # Glue: image mean-pool over non-overlapping patches, done BEFORE the
    # kernel so only (B, Dp) is DMA'd instead of (B, P, Dp).
    gh, gw = H_img // p, W_img // p
    img_pooled = image_tensor.reshape(B, C_in, gh, p, gw, p).mean(axis=(2, 4))
    img_pooled = img_pooled.reshape(B, C_in * p * p).astype(jnp.bfloat16)

    # Batch tile: full B at toy sizes, multiple-of-8 tile otherwise.
    TB = B if B <= 8 else min(64, (B // 8) * 8)
    grid = (pl.cdiv(B, TB),)

    flops = 2 * B * (S * E + E * H + Dp * H + 2 * H * CPAD)
    bytes_accessed = (
        tok_emb.size * 2 + mask_norm.size * 4 + img_pooled.size * 2
        + params["w_text"].size * 2 + params["w_img"].size * 2
        + params["w_cls_t"].size * 2 + params["w_cls_i"].size * 2
        + params["b_cls_pad"].size * 4 + B * CPAD * 4
    )
    cost = pl.CostEstimate(flops=flops, transcendentals=0,
                           bytes_accessed=bytes_accessed)

    out_padded = pl.pallas_call(
        clip_memes_kernel,
        out_shape=jax.ShapeDtypeStruct((B, CPAD), jnp.float32),
        grid=grid,
        in_specs=[
            pl.BlockSpec((TB, S, E), lambda i: (i, 0, 0)),   # tok_emb
            pl.BlockSpec((TB, S), lambda i: (i, 0)),         # mask_norm
            pl.BlockSpec((TB, Dp), lambda i: (i, 0)),        # img_pooled
            pl.BlockSpec((E, H), lambda i: (0, 0)),          # w_text
            pl.BlockSpec((Dp, H), lambda i: (0, 0)),         # w_img
            pl.BlockSpec((H, CPAD), lambda i: (0, 0)),       # w_cls_t
            pl.BlockSpec((H, CPAD), lambda i: (0, 0)),       # w_cls_i
            pl.BlockSpec((1, CPAD), lambda i: (0, 0)),       # b_cls
        ],
        out_specs=pl.BlockSpec((TB, CPAD), lambda i: (i, 0)),
        compiler_params=pltpu.CompilerParams(
            dimension_semantics=("parallel",)),
        cost_estimate=cost,
    )(
        tok_emb, mask_norm, img_pooled,
        params["w_text"], params["w_img"],
        params["w_cls_t"], params["w_cls_i"], params["b_cls_pad"],
    )
    return out_padded[:, :num_classes]


# ------------------------------ param init --------------------------------- #
def init_params(key, *, vocab=64, embed=32, hidden=32, patch_size=8,
                img_channels=3, num_classes=4):
    ks = jax.random.split(key, 5)
    d_patch = img_channels * patch_size * patch_size
    scale = 0.02
    cpad = max(LANE, ((num_classes + LANE - 1) // LANE) * LANE)

    # PyTorch-layout classifier: nn.Linear(hidden*2, num_classes)
    #   weight (num_classes, 2*hidden), bias (num_classes,)
    w_cls = scale * jax.random.normal(ks[3], (num_classes, 2 * hidden), jnp.float32)
    b_cls = scale * jax.random.normal(ks[4], (num_classes,), jnp.float32)

    # Pre-split / pre-transpose / lane-pad ONCE at init (not per forward).
    w_cls_t = jnp.zeros((hidden, cpad), jnp.float32).at[:, :num_classes].set(
        w_cls[:, :hidden].T)
    w_cls_i = jnp.zeros((hidden, cpad), jnp.float32).at[:, :num_classes].set(
        w_cls[:, hidden:].T)
    b_pad = jnp.zeros((1, cpad), jnp.float32).at[0, :num_classes].set(b_cls)

    return {
        "patch_size": patch_size,
        "num_classes": num_classes,
        "tok_emb_table": (scale * jax.random.normal(
            ks[0], (vocab, embed), jnp.float32)).astype(jnp.bfloat16),
        "w_text": (scale * jax.random.normal(
            ks[1], (embed, hidden), jnp.float32)).astype(jnp.bfloat16),
        "w_img": (scale * jax.random.normal(
            ks[2], (d_patch, hidden), jnp.float32)).astype(jnp.bfloat16),
        "w_cls_t": w_cls_t.astype(jnp.bfloat16),
        "w_cls_i": w_cls_i.astype(jnp.bfloat16),
        "b_cls_pad": b_pad,   # f32, (1, cpad)
    }


if __name__ == "__main__":
    key = jax.random.PRNGKey(0)
    k_ids, k_img, k_param = jax.random.split(key, 3)

    B, S = 2, 8
    vocab, embed, hidden, num_classes = 64, 32, 32, 4
    img_shape = (B, 3, 16, 16)   # NCHW, patch_size=8 -> pooled over 4 patches

    params = init_params(k_param, vocab=vocab, embed=embed, hidden=hidden,
                         patch_size=8, img_channels=3, num_classes=num_classes)

    input_ids = jax.random.randint(k_ids, (B, S), 0, vocab, dtype=jnp.int32)
    attention_mask = jnp.concatenate(
        [jnp.ones((B, S - 2), jnp.int32), jnp.zeros((B, 2), jnp.int32)], axis=1)
    image_tensor = jax.random.normal(k_img, img_shape, jnp.float32)

    logits = clip_memes_forward(input_ids, attention_mask, image_tensor, params)
    jax.block_until_ready(logits)
    assert logits.shape == (B, num_classes)
    print("KERNEL_OK")
</pallas_src>

<mosaic_0001>
module attributes {stable_mosaic.version = 11 : i64} {
  func.func @clip_memes_kernel(%arg0: i32, %arg1: memref<2x8x32xbf16, #tpu.memory_space<vmem>>, %arg2: memref<2x8xf32, #tpu.memory_space<vmem>>, %arg3: memref<2x192xbf16, #tpu.memory_space<vmem>>, %arg4: memref<32x32xbf16, #tpu.memory_space<vmem>>, %arg5: memref<192x32xbf16, #tpu.memory_space<vmem>>, %arg6: memref<32x128xbf16, #tpu.memory_space<vmem>>, %arg7: memref<32x128xbf16, #tpu.memory_space<vmem>>, %arg8: memref<1x128xf32, #tpu.memory_space<vmem>>, %arg9: memref<2x128xf32, #tpu.memory_space<vmem>>) attributes {dimension_semantics = [#tpu.dimension_semantics<parallel>], iteration_bounds = array<i64: 1>, scalar_prefetch = 0 : i64, scratch_operands = 0 : i64, tpu.core_type = #tpu.core_type<tc>, window_params = [{transform_indices = @transform_0, window_bounds = array<i64: 2, 8, 32>}, {transform_indices = @transform_1, window_bounds = array<i64: 2, 8>}, {transform_indices = @transform_2, window_bounds = array<i64: 2, 192>}, {pipeline_mode = #tpu.pipeline_mode<synchronous>, transform_indices = @transform_3, window_bounds = array<i64: 32, 32>}, {pipeline_mode = #tpu.pipeline_mode<synchronous>, transform_indices = @transform_4, window_bounds = array<i64: 192, 32>}, {pipeline_mode = #tpu.pipeline_mode<synchronous>, transform_indices = @transform_5, window_bounds = array<i64: 32, 128>}, {pipeline_mode = #tpu.pipeline_mode<synchronous>, transform_indices = @transform_6, window_bounds = array<i64: 32, 128>}, {pipeline_mode = #tpu.pipeline_mode<synchronous>, transform_indices = @transform_7, window_bounds = array<i64: 1, 128>}, {transform_indices = @transform_8, window_bounds = array<i64: 2, 128>}]} {
    %c0 = arith.constant 0 : index
    %c0_0 = arith.constant 0 : index
    %c0_1 = arith.constant 0 : index
    %0 = vector.load %arg1[%c0, %c0_0, %c0_1] : memref<2x8x32xbf16, #tpu.memory_space<vmem>>, vector<2x8x32xbf16>
    %1 = arith.extf %0 : vector<2x8x32xbf16> to vector<2x8x32xf32>
    %c0_2 = arith.constant 0 : index
    %c0_3 = arith.constant 0 : index
    %2 = vector.load %arg2[%c0_2, %c0_3] : memref<2x8xf32, #tpu.memory_space<vmem>>, vector<2x8xf32>
    %3 = vector.shape_cast %2 : vector<2x8xf32> to vector<2x8x1xf32>
    %4 = vector.broadcast %3 : vector<2x8x1xf32> to vector<2x8x32xf32>
    %5 = arith.mulf %1, %4 : vector<2x8x32xf32>
    %cst = arith.constant dense<0.000000e+00> : vector<2x32xf32>
    %6 = vector.multi_reduction <add>, %5, %cst [1] : vector<2x8x32xf32> to vector<2x32xf32>
    %7 = arith.truncf %6 : vector<2x32xf32> to vector<2x32xbf16>
    %c0_4 = arith.constant 0 : index
    %c0_5 = arith.constant 0 : index
    %8 = vector.load %arg4[%c0_4, %c0_5] : memref<32x32xbf16, #tpu.memory_space<vmem>>, vector<32x32xbf16>
    %cst_6 = arith.constant dense<0.000000e+00> : vector<2x32xf32>
    %9 = tpu.matmul %7, %8, %cst_6 {dimension_numbers = #tpu.dot_dimension_numbers<[1], [0], [0], [1], [0, 0, 1, 1], [], []>} : vector<2x32xbf16>, vector<32x32xbf16>, vector<2x32xf32> -> vector<2x32xf32>
    %c0_7 = arith.constant 0 : index
    %c0_8 = arith.constant 0 : index
    %10 = vector.load %arg3[%c0_7, %c0_8] : memref<2x192xbf16, #tpu.memory_space<vmem>>, vector<2x192xbf16>
    %c0_9 = arith.constant 0 : index
    %c0_10 = arith.constant 0 : index
    %11 = vector.load %arg5[%c0_9, %c0_10] : memref<192x32xbf16, #tpu.memory_space<vmem>>, vector<192x32xbf16>
    %cst_11 = arith.constant dense<0.000000e+00> : vector<2x32xf32>
    %12 = tpu.matmul %10, %11, %cst_11 {dimension_numbers = #tpu.dot_dimension_numbers<[1], [0], [0], [1], [0, 0, 1, 1], [], []>} : vector<2x192xbf16>, vector<192x32xbf16>, vector<2x32xf32> -> vector<2x32xf32>
    %13 = arith.truncf %9 : vector<2x32xf32> to vector<2x32xbf16>
    %c0_12 = arith.constant 0 : index
    %c0_13 = arith.constant 0 : index
    %14 = vector.load %arg6[%c0_12, %c0_13] : memref<32x128xbf16, #tpu.memory_space<vmem>>, vector<32x128xbf16>
    %cst_14 = arith.constant dense<0.000000e+00> : vector<2x128xf32>
    %15 = tpu.matmul %13, %14, %cst_14 {dimension_numbers = #tpu.dot_dimension_numbers<[1], [0], [0], [1], [0, 0, 1, 1], [], []>} : vector<2x32xbf16>, vector<32x128xbf16>, vector<2x128xf32> -> vector<2x128xf32>
    %16 = arith.truncf %12 : vector<2x32xf32> to vector<2x32xbf16>
    %c0_15 = arith.constant 0 : index
    %c0_16 = arith.constant 0 : index
    %17 = vector.load %arg7[%c0_15, %c0_16] : memref<32x128xbf16, #tpu.memory_space<vmem>>, vector<32x128xbf16>
    %cst_17 = arith.constant dense<0.000000e+00> : vector<2x128xf32>
    %18 = tpu.matmul %16, %17, %cst_17 {dimension_numbers = #tpu.dot_dimension_numbers<[1], [0], [0], [1], [0, 0, 1, 1], [], []>} : vector<2x32xbf16>, vector<32x128xbf16>, vector<2x128xf32> -> vector<2x128xf32>
    %19 = arith.addf %15, %18 : vector<2x128xf32>
    %c0_18 = arith.constant 0 : index
    %c0_19 = arith.constant 0 : index
    %20 = vector.load %arg8[%c0_18, %c0_19] : memref<1x128xf32, #tpu.memory_space<vmem>>, vector<1x128xf32>
    %21 = vector.broadcast %20 : vector<1x128xf32> to vector<2x128xf32>
    %22 = arith.addf %19, %21 : vector<2x128xf32>
    %c0_20 = arith.constant 0 : index
    %c0_21 = arith.constant 0 : index
    %23 = vector.load %arg9[%c0_20, %c0_21] : memref<2x128xf32, #tpu.memory_space<vmem>>, vector<2x128xf32>
    tpu.vector_store %arg9[%c0_20, %c0_21], %22 {strides = array<i32>} : memref<2x128xf32, #tpu.memory_space<vmem>>, vector<2x128xf32>,
    return
  }
  func.func @transform_0(%arg0: i32) -> (i32, i32, i32) {
    %c0_i32 = arith.constant 0 : i32
    %c0_i32_0 = arith.constant 0 : i32
    %c0_i32_1 = arith.constant 0 : i32
    return %arg0, %c0_i32, %c0_i32_0 : i32, i32, i32
  }
  func.func @transform_1(%arg0: i32) -> (i32, i32) {
    %c0_i32 = arith.constant 0 : i32
    %c0_i32_0 = arith.constant 0 : i32
    return %arg0, %c0_i32 : i32, i32
  }
  func.func @transform_2(%arg0: i32) -> (i32, i32) {
    %c0_i32 = arith.constant 0 : i32
    %c0_i32_0 = arith.constant 0 : i32
    return %arg0, %c0_i32 : i32, i32
  }
  func.func @transform_3(%arg0: i32) -> (i32, i32) {
    %c0_i32 = arith.constant 0 : i32
    %c0_i32_0 = arith.constant 0 : i32
    %c0_i32_1 = arith.constant 0 : i32
    return %c0_i32, %c0_i32_0 : i32, i32
  }
  func.func @transform_4(%arg0: i32) -> (i32, i32) {
    %c0_i32 = arith.constant 0 : i32
    %c0_i32_0 = arith.constant 0 : i32
    %c0_i32_1 = arith.constant 0 : i32
    return %c0_i32, %c0_i32_0 : i32, i32
  }
  func.func @transform_5(%arg0: i32) -> (i32, i32) {
    %c0_i32 = arith.constant 0 : i32
    %c0_i32_0 = arith.constant 0 : i32
    %c0_i32_1 = arith.constant 0 : i32
    return %c0_i32, %c0_i32_0 : i32, i32
  }
  func.func @transform_6(%arg0: i32) -> (i32, i32) {
    %c0_i32 = arith.constant 0 : i32
    %c0_i32_0 = arith.constant 0 : i32
    %c0_i32_1 = arith.constant 0 : i32
    return %c0_i32, %c0_i32_0 : i32, i32
  }
  func.func @transform_7(%arg0: i32) -> (i32, i32) {
    %c0_i32 = arith.constant 0 : i32
    %c0_i32_0 = arith.constant 0 : i32
    %c0_i32_1 = arith.constant 0 : i32
    return %c0_i32, %c0_i32_0 : i32, i32
  }
  func.func @transform_8(%arg0: i32) -> (i32, i32) {
    %c0_i32 = arith.constant 0 : i32
    %c0_i32_0 = arith.constant 0 : i32
    return %arg0, %c0_i32 : i32, i32
  }
}

</mosaic_0001>

<llo_original>
// kernel: tpu_custom_call.1
$region0: #{tpu_custom_call.1}
  #allocation0 [shape = 'u32[]', space=smem, size = 0x4, offset = 0x4, fixed_abs, tag = 'smem constant byte address 0x4 - core index']
  #allocation1 [shape = 'u32[144,128]{1,0:T(1,128)}', space=vmem, size = 0x12000, scoped, tag = 'internal scratch']
  %s0 = inlined_call_operand.vmem [shape: bf16[2,8,32], index: 0, kind: input, shape index: {}]
  %s1 = inlined_call_operand.vmem [shape: f32[2,8], index: 1, kind: input, shape index: {}]
  %s2 = inlined_call_operand.vmem [shape: bf16[2,192], index: 2, kind: input, shape index: {}]
  %s3 = inlined_call_operand.vmem [shape: bf16[32,32], index: 3, kind: input, shape index: {}]
  %s4 = inlined_call_operand.vmem [shape: bf16[192,32], index: 4, kind: input, shape index: {}]
  %s5 = inlined_call_operand.vmem [shape: bf16[32,128], index: 5, kind: input, shape index: {}]
  %s6 = inlined_call_operand.vmem [shape: bf16[32,128], index: 6, kind: input, shape index: {}]
  %s7 = inlined_call_operand.vmem [shape: f32[1,128], index: 7, kind: input, shape index: {}]
  %s8 = inlined_call_operand.hbm [shape: f32[2,128], index: 8, kind: output, shape index: {}]
  %s9 = sld [smem:[#allocation0]]
  $region42: #{tpu_custom_call.1} parent=0
    _
  %s11 = ssub.s32 1, %s9
  %s12 = scalar_select 0, %s11, %s9
  $region1: #{tpu_custom_call.1} parent=0
    #allocation2 [shape = 'u8[1024]{0}', space=vmem, size = 0x400, scoped, tag = 'output window, operand 0, single buffered']
    #allocation3 [shape = 's32[1]{0}', space=sflag, size = 0x4, scoped, tag = 'scoped memory for tpu_custom_call.1']
    %13 = vsyncpa [#allocation3], 0
    // Predicated region
    $region2: #{tpu_custom_call.1} parent=1 // pred_check
      _
    $region3: #{tpu_custom_call.1} parent=1 // pred_check_branch
      %15 = sbr.rel (0) target = $region5
    $region4: #{tpu_custom_call.1} parent=1 // pred_region
      _
    $region5: #{tpu_custom_call.1} parent=1 // pred_fallthru
      _
    // Predicated region
    $region6: #{tpu_custom_call.1} parent=1 // pred_check
      _
    $region7: #{tpu_custom_call.1} parent=1 // pred_check_branch
      %17 = sbr.rel (0) target = $region9
    $region8: #{tpu_custom_call.1} parent=1 // pred_region
      _
    $region9: #{tpu_custom_call.1} parent=1 // pred_fallthru
      _
    // Predicated region
    $region10: #{tpu_custom_call.1} parent=1 // pred_check
      _
    $region11: #{tpu_custom_call.1} parent=1 // pred_check_branch
      %19 = sbr.rel (0) target = $region13
    $region12: #{tpu_custom_call.1} parent=1 // pred_region
      _
    $region13: #{tpu_custom_call.1} parent=1 // pred_fallthru
      _
    // Predicated region
    $region14: #{tpu_custom_call.1} parent=1 // pred_check
      _
    $region15: #{tpu_custom_call.1} parent=1 // pred_check_branch
      %21 = sbr.rel (0) target = $region17
    $region16: #{tpu_custom_call.1} parent=1 // pred_region
      _
    $region17: #{tpu_custom_call.1} parent=1 // pred_fallthru
      _
    // Predicated region
    $region18: #{tpu_custom_call.1} parent=1 // pred_check
      _
    $region19: #{tpu_custom_call.1} parent=1 // pred_check_branch
      %23 = sbr.rel (0) target = $region21
    $region20: #{tpu_custom_call.1} parent=1 // pred_region
      _
    $region21: #{tpu_custom_call.1} parent=1 // pred_fallthru
      _
    // Predicated region
    $region22: #{tpu_custom_call.1} parent=1 // pred_check
      _
    $region23: #{tpu_custom_call.1} parent=1 // pred_check_branch
      %25 = sbr.rel (0) target = $region25
    $region24: #{tpu_custom_call.1} parent=1 // pred_region
      _
    $region25: #{tpu_custom_call.1} parent=1 // pred_fallthru
      _
    // Predicated region
    $region26: #{tpu_custom_call.1} parent=1 // pred_check
      _
    $region27: #{tpu_custom_call.1} parent=1 // pred_check_branch
      %27 = sbr.rel (0) target = $region29
    $region28: #{tpu_custom_call.1} parent=1 // pred_region
      _
    $region29: #{tpu_custom_call.1} parent=1 // pred_fallthru
      _
    // Predicated region
    $region30: #{tpu_custom_call.1} parent=1 // pred_check
      _
    $region31: #{tpu_custom_call.1} parent=1 // pred_check_branch
      %29 = sbr.rel (0) target = $region33
    $region32: #{tpu_custom_call.1} parent=1 // pred_region
      _
    $region33: #{tpu_custom_call.1} parent=1 // pred_fallthru
      _
    %v31 = vld [vmem:[%s0] sm:$0xf]
    %v32 = vld [vmem:[%s0 + $0x4] sm:$0xf]
    %v33 = vunpack.c.l.bf16 %v31
    %v34 = vunpack.c.l.bf16 %v32
    %v35 = vld [vmem:[%s1] sm:$0x3]
    %v36 = vlaneseq
    %v37 = vshrl.u32 %v36, 7
    %v38 = vsub.s32 0, %v37
    %v39 = vrot.slane %v35, %v38
    %41 = vbcast.lane.b32.xlu0 %v39, 256
    %v42 = vpop.permute.xlu0 %41
    %v43 = vlaneseq
    %v44 = vshrl.u32 %v43, 7
    %v45 = vsub.s32 1, %v44
    %v46 = vrot.slane %v35, %v45
    %48 = vbcast.lane.b32.xlu0 %v46, 256
    %v49 = vpop.permute.xlu0 %48
    %v50 = vmul.f32 %v33, %v42
    %v51 = vmul.f32 %v34, %v49
    %vm52 = vcmask 261120
    %v53 = vsel %vm52, %v50, 0.0
    %v54 = vrot.slane %v53, 4
    %v55 = vadd.f32 %v53, %v54
    %v56 = vrot.slane %v55, 2
    %v57 = vadd.f32 %v55, %v56
    %v58 = vrot.slane %v57, 1
    %v59 = vadd.f32 %v57, %v58
    %v60 = vsel %vm52, %v51, 0.0
    %v61 = vrot.slane %v60, 4
    %v62 = vadd.f32 %v60, %v61
    %v63 = vrot.slane %v62, 2
    %v64 = vadd.f32 %v62, %v63
    %v65 = vrot.slane %v64, 1
    %v66 = vadd.f32 %v64, %v65
    %v67 = vpack.c.bf16 %v59, %v59
    %v68 = vpack.c.bf16 %v66, %v66
    %v69 = vld [vmem:[%s3] sm:$0xf]
    %v70 = vld [vmem:[%s3 + $0x4] sm:$0xf]
    %v71 = vld [vmem:[%s3 + $0x8] sm:$0xf]
    %v72 = vld [vmem:[%s3 + $0xc] sm:$0xf]
    %v75 = vunpack.c.l.b16 %v67
    %v76 = vunpack.c.l.b16 %v68
    %vm77 = vcmask 1041409
    %v78 = vsel %vm77, %v76, %v75
    %v79 = vpack.c.b16 %v78, %v78
    %v84 = vunpack.c.l.b16 %v69
    %v85 = vunpack.c.l.b16 %v70
    %v86 = vunpack.c.l.b16 %v71
    %v87 = vunpack.c.l.b16 %v72
    %v88 = vpack.c.b16 %v85, %v84
    %v89 = vpack.c.b16 %v87, %v86
    %v93 = vsel %vm52, %v79, 0
    %95 = vmatprep.subr.bf16.mxu0 0
    %96 = vmatpush1.bf16.msra.mxu0 0
    %97 = vmatprep.subr.bf16.mxu0 0
    %98 = vmatpush1.bf16.msra.mxu0 0
    %99 = vmatprep.subr.bf16.mxu0 0
    %100 = vmatpush1.bf16.msra.mxu0 0
    %101 = vmatprep.subr.bf16.mxu0 0
    %102 = vmatpush1.bf16.msra.mxu0 0
    %103 = vmatprep.subr.bf16.mxu0 0
    %104 = vmatpush1.bf16.msra.mxu0 0
    %105 = vmatprep.subr.bf16.mxu0 0
    %106 = vmatpush1.bf16.msra.mxu0 0
    %107 = vmatprep.subr.bf16.mxu0 0
    %108 = vmatpush1.bf16.msra.mxu0 %v89
    %109 = vmatprep.subr.bf16.mxu0 0
    %110 = vmatpush1.bf16.msra.mxu0 %v88
    %111 = vmatprep.subr.bf16.mxu0 0
    %112 = vmatpush2.bf16.msra.mxu0 0
    %113 = vmatprep.subr.bf16.mxu0 0
    %114 = vmatpush2.bf16.msra.mxu0 0
    %115 = vmatprep.subr.bf16.mxu0 0
    %116 = vmatpush2.bf16.msra.mxu0 0
    %117 = vmatprep.subr.bf16.mxu0 0
    %118 = vmatpush2.bf16.msra.mxu0 0
    %119 = vmatprep.subr.bf16.mxu0 0
    %120 = vmatpush2.bf16.msra.mxu0 0
    %121 = vmatprep.subr.bf16.mxu0 0
    %122 = vmatpush2.bf16.msra.mxu0 0
    %123 = vmatprep.subr.bf16.mxu0 0
    %124 = vmatpush2.bf16.msra.mxu0 0
    %125 = vmatprep.subr.bf16.mxu0 0
    %126 = vmatpush2.bf16.msra.mxu0 0
    %127 = vmatprep.mubr.bf16.mxu0 0
    %128 = vmatmul.mubr.bf16.gmra.mxu0 %v93
    %v129 = vpop.f32.mrf.mxu0
    %v130 = vadd.f32 0.0, %v129
    %v131 = vpop.f32.mrf.mxu0
    %v132 = vpop.f32.mrf.mxu0
    %v133 = vpop.f32.mrf.mxu0
    %134 = vdwg.mxu0
    %v135 = vld [vmem:[%s2] sm:$0x3]
    %v136 = vld [vmem:[%s4] sm:$0xf]
    %v137 = vld [vmem:[%s4 + $0x4] sm:$0xf]
    %v138 = vld [vmem:[%s4 + $0x8] sm:$0xf]
    %v139 = vld [vmem:[%s4 + $0xc] sm:$0xf]
    %v140 = vld [vmem:[%s4 + $0x10] sm:$0xf]
    %v141 = vld [vmem:[%s4 + $0x14] sm:$0xf]
    %v142 = vld [vmem:[%s4 + $0x18] sm:$0xf]
    %v143 = vld [vmem:[%s4 + $0x1c] sm:$0xf]
    %v144 = vld [vmem:[%s4 + $0x20] sm:$0xf]
    %v145 = vld [vmem:[%s4 + $0x24] sm:$0xf]
    %v146 = vld [vmem:[%s4 + $0x28] sm:$0xf]
    %v147 = vld [vmem:[%s4 + $0x2c] sm:$0xf]
    %v148 = vld [vmem:[%s4 + $0x30] sm:$0xf]
    %v149 = vld [vmem:[%s4 + $0x34] sm:$0xf]
    %v150 = vld [vmem:[%s4 + $0x38] sm:$0xf]
    %v151 = vld [vmem:[%s4 + $0x3c] sm:$0xf]
    %v152 = vld [vmem:[%s4 + $0x40] sm:$0xf]
    %v153 = vld [vmem:[%s4 + $0x44] sm:$0xf]
    %v154 = vld [vmem:[%s4 + $0x48] sm:$0xf]
    %v155 = vld [vmem:[%s4 + $0x4c] sm:$0xf]
    %v156 = vld [vmem:[%s4 + $0x50] sm:$0xf]
    %v157 = vld [vmem:[%s4 + $0x54] sm:$0xf]
    %v158 = vld [vmem:[%s4 + $0x58] sm:$0xf]
    %v159 = vld [vmem:[%s4 + $0x5c] sm:$0xf]
    %v162 = vunpack.c.l.s4 1966171168
    %v163 = vunpack.c.0.s8 %v162
    %v164 = vlaneseq
    %v165 = vshrl.u32 %v164, 7
    %v166 = vsub.s32 %v163, %v165
    %v167 = vrot.slane %v135, %v166
    %v168 = vcombine.high %v167, %v167
    %v170 = vunpack.c.l.s4 1966171168
    %v171 = vunpack.c.0.s8 %v170
    %v172 = vlaneseq
    %v173 = vshrl.u32 %v172, 7
    %v174 = vsub.s32 %v171, %v173
    %v175 = vrot.slane %v167, %v174
    %v177 = vunpack.c.l.s4 1966171168
    %v178 = vunpack.c.0.s8 %v177
    %v179 = vlaneseq
    %v180 = vshrl.u32 %v179, 7
    %v181 = vsub.s32 %v178, %v180
    %v182 = vrot.slane %v168, %v181
    %v208 = vunpack.c.l.b16 %v136
    %v209 = vunpack.c.l.b16 %v137
    %v210 = vunpack.c.l.b16 %v138
    %v211 = vunpack.c.l.b16 %v139
    %v212 = vunpack.c.l.b16 %v140
    %v213 = vunpack.c.l.b16 %v141
    %v214 = vunpack.c.l.b16 %v142
    %v215 = vunpack.c.l.b16 %v143
    %v216 = vunpack.c.l.b16 %v144
    %v217 = vunpack.c.l.b16 %v145
    %v218 = vunpack.c.l.b16 %v146
    %v219 = vunpack.c.l.b16 %v147
    %v220 = vunpack.c.l.b16 %v148
    %v221 = vunpack.c.l.b16 %v149
    %v222 = vunpack.c.l.b16 %v150
    %v223 = vunpack.c.l.b16 %v151
    %v224 = vunpack.c.l.b16 %v152
    %v225 = vunpack.c.l.b16 %v153
    %v226 = vunpack.c.l.b16 %v154
    %v227 = vunpack.c.l.b16 %v155
    %v228 = vunpack.c.l.b16 %v156
    %v229 = vunpack.c.l.b16 %v157
    %v230 = vunpack.c.l.b16 %v158
    %v231 = vunpack.c.l.b16 %v159
    %v232 = vpack.c.b16 %v209, %v208
    %v233 = vpack.c.b16 %v211, %v210
    %v234 = vpack.c.b16 %v213, %v212
    %v235 = vpack.c.b16 %v215, %v214
    %v236 = vpack.c.b16 %v217, %v216
    %v237 = vpack.c.b16 %v219, %v218
    %v238 = vpack.c.b16 %v221, %v220
    %v239 = vpack.c.b16 %v223, %v222
    %v240 = vpack.c.b16 %v225, %v224
    %v241 = vpack.c.b16 %v227, %v226
    %v242 = vpack.c.b16 %v229, %v228
    %v243 = vpack.c.b16 %v231, %v230
    %vm256 = vcmask 523264
    %v258 = vsel %vm256, %v182, 0
    %260 = vmatprep.subr.bf16.mxu0 0
    %261 = vmatpush1.bf16.msra.mxu0 %v239
    %262 = vmatprep.subr.bf16.mxu0 0
    %263 = vmatpush1.bf16.msra.mxu0 %v238
    %264 = vmatprep.subr.bf16.mxu0 0
    %265 = vmatpush1.bf16.msra.mxu0 %v237
    %266 = vmatprep.subr.bf16.mxu0 0
    %267 = vmatpush1.bf16.msra.mxu0 %v236
    %268 = vmatprep.subr.bf16.mxu0 0
    %269 = vmatpush1.bf16.msra.mxu0 %v235
    %270 = vmatprep.subr.bf16.mxu0 0
    %271 = vmatpush1.bf16.msra.mxu0 %v234
    %272 = vmatprep.subr.bf16.mxu0 0
    %273 = vmatpush1.bf16.msra.mxu0 %v233
    %274 = vmatprep.subr.bf16.mxu0 0
    %275 = vmatpush1.bf16.msra.mxu0 %v232
    %276 = vmatprep.subr.bf16.mxu0 0
    %277 = vmatpush2.bf16.msra.mxu0 0
    %278 = vmatprep.subr.bf16.mxu0 0
    %279 = vmatpush2.bf16.msra.mxu0 0
    %280 = vmatprep.subr.bf16.mxu0 0
    %281 = vmatpush2.bf16.msra.mxu0 0
    %282 = vmatprep.subr.bf16.mxu0 0
    %283 = vmatpush2.bf16.msra.mxu0 0
    %284 = vmatprep.subr.bf16.mxu0 0
    %285 = vmatpush2.bf16.msra.mxu0 %v243
    %286 = vmatprep.subr.bf16.mxu0 0
    %287 = vmatpush2.bf16.msra.mxu0 %v242
    %288 = vmatprep.subr.bf16.mxu0 0
    %289 = vmatpush2.bf16.msra.mxu0 %v241
    %290 = vmatprep.subr.bf16.mxu0 0
    %291 = vmatpush2.bf16.msra.mxu0 %v240
    %292 = vmatprep.mubr.bf16.mxu0 %v258
    %293 = vmatmul.mubr.bf16.gmra.mxu0 %v175
    %v294 = vpop.f32.mrf.mxu0
    %v295 = vadd.f32 0.0, %v294
    %v296 = vpop.f32.mrf.mxu0
    %v297 = vpop.f32.mrf.mxu0
    %v298 = vpop.f32.mrf.mxu0
    %299 = vdwg.mxu0
    %v300 = vpack.c.bf16 %v130, %v130
    %v301 = vld [vmem:[%s5] sm:$0xf]
    %v302 = vld [vmem:[%s5 + $0x4] sm:$0xf]
    %v303 = vld [vmem:[%s5 + $0x8] sm:$0xf]
    %v304 = vld [vmem:[%s5 + $0xc] sm:$0xf]
    %v305 = vpack.c.bf16 %v295, %v295
    %v306 = vld [vmem:[%s6] sm:$0xf]
    %v307 = vld [vmem:[%s6 + $0x4] sm:$0xf]
    %v308 = vld [vmem:[%s6 + $0x8] sm:$0xf]
    %v309 = vld [vmem:[%s6 + $0xc] sm:$0xf]
    %v314 = vunpack.c.l.b16 %v306
    %v315 = vunpack.c.l.b16 %v307
    %v316 = vunpack.c.l.b16 %v308
    %v317 = vunpack.c.l.b16 %v309
    %v318 = vpack.c.b16 %v315, %v314
    %v319 = vpack.c.b16 %v317, %v316
    %v323 = vsel %vm52, %v305, 0
    %325 = vmatprep.subr.bf16.mxu0 0
    %326 = vmatpush1.bf16.msra.mxu0 0
    %327 = vmatprep.subr.bf16.mxu0 0
    %328 = vmatpush1.bf16.msra.mxu0 0
    %329 = vmatprep.subr.bf16.mxu0 0
    %330 = vmatpush1.bf16.msra.mxu0 0
    %331 = vmatprep.subr.bf16.mxu0 0
    %332 = vmatpush1.bf16.msra.mxu0 0
    %333 = vmatprep.subr.bf16.mxu0 0
    %334 = vmatpush1.bf16.msra.mxu0 0
    %335 = vmatprep.subr.bf16.mxu0 0
    %336 = vmatpush1.bf16.msra.mxu0 0
    %337 = vmatprep.subr.bf16.mxu0 0
    %338 = vmatpush1.bf16.msra.mxu0 %v319
    %339 = vmatprep.subr.bf16.mxu0 0
    %340 = vmatpush1.bf16.msra.mxu0 %v318
    %341 = vmatprep.subr.bf16.mxu0 0
    %342 = vmatpush2.bf16.msra.mxu0 0
    %343 = vmatprep.subr.bf16.mxu0 0
    %344 = vmatpush2.bf16.msra.mxu0 0
    %345 = vmatprep.subr.bf16.mxu0 0
    %346 = vmatpush2.bf16.msra.mxu0 0
    %347 = vmatprep.subr.bf16.mxu0 0
    %348 = vmatpush2.bf16.msra.mxu0 0
    %349 = vmatprep.subr.bf16.mxu0 0
    %350 = vmatpush2.bf16.msra.mxu0 0
    %351 = vmatprep.subr.bf16.mxu0 0
    %352 = vmatpush2.bf16.msra.mxu0 0
    %353 = vmatprep.subr.bf16.mxu0 0
    %354 = vmatpush2.bf16.msra.mxu0 0
    %355 = vmatprep.subr.bf16.mxu0 0
    %356 = vmatpush2.bf16.msra.mxu0 0
    %357 = vmatprep.mubr.bf16.mxu0 0
    %358 = vmatmul.mubr.bf16.gmra.mxu0 %v323
    %v359 = vpop.f32.mrf.mxu0
    %v360 = vadd.f32 0.0, %v359
    %v361 = vpop.f32.mrf.mxu0
    %v362 = vpop.f32.mrf.mxu0
    %v363 = vpop.f32.mrf.mxu0
    %364 = vdwg.mxu0
    %v369 = vunpack.c.l.b16 %v301
    %v370 = vunpack.c.l.b16 %v302
    %v371 = vunpack.c.l.b16 %v303
    %v372 = vunpack.c.l.b16 %v304
    %v373 = vpack.c.b16 %v370, %v369
    %v374 = vpack.c.b16 %v372, %v371
    %v378 = vsel %vm52, %v300, 0
    %380 = vmatprep.subr.bf16.mxu0 0
    %381 = vmatpush1.bf16.msra.mxu0 0
    %382 = vmatprep.subr.bf16.mxu0 0
    %383 = vmatpush1.bf16.msra.mxu0 0
    %384 = vmatprep.subr.bf16.mxu0 0
    %385 = vmatpush1.bf16.msra.mxu0 0
    %386 = vmatprep.subr.bf16.mxu0 0
    %387 = vmatpush1.bf16.msra.mxu0 0
    %388 = vmatprep.subr.bf16.mxu0 0
    %389 = vmatpush1.bf16.msra.mxu0 0
    %390 = vmatprep.subr.bf16.mxu0 0
    %391 = vmatpush1.bf16.msra.mxu0 0
    %392 = vmatprep.subr.bf16.mxu0 0
    %393 = vmatpush1.bf16.msra.mxu0 %v374
    %394 = vmatprep.subr.bf16.mxu0 0
    %395 = vmatpush1.bf16.msra.mxu0 %v373
    %396 = vmatprep.subr.bf16.mxu0 0
    %397 = vmatpush2.bf16.msra.mxu0 0
    %398 = vmatprep.subr.bf16.mxu0 0
    %399 = vmatpush2.bf16.msra.mxu0 0
    %400 = vmatprep.subr.bf16.mxu0 0
    %401 = vmatpush2.bf16.msra.mxu0 0
    %402 = vmatprep.subr.bf16.mxu0 0
    %403 = vmatpush2.bf16.msra.mxu0 0
    %404 = vmatprep.subr.bf16.mxu0 0
    %405 = vmatpush2.bf16.msra.mxu0 0
    %406 = vmatprep.subr.bf16.mxu0 0
    %407 = vmatpush2.bf16.msra.mxu0 0
    %408 = vmatprep.subr.bf16.mxu0 0
    %409 = vmatpush2.bf16.msra.mxu0 0
    %410 = vmatprep.subr.bf16.mxu0 0
    %411 = vmatpush2.bf16.msra.mxu0 0
    %412 = vmatprep.mubr.bf16.mxu0 0
    %413 = vmatmul.mubr.bf16.gmra.mxu0 %v378
    %v414 = vpop.f32.mrf.mxu0
    %v415 = vadd.f32 %v360, %v414
    %v416 = vpop.f32.mrf.mxu0
    %v417 = vpop.f32.mrf.mxu0
    %v418 = vpop.f32.mrf.mxu0
    %419 = vdwg.mxu0
    %v420 = vld [vmem:[%s7] sm:$0x1]
    %v422 = vlaneseq
    %v423 = vshrl.u32 %v422, 7
    %v424 = vsub.s32 0, %v423
    %v425 = vrot.slane %v420, %v424
    %v427 = vadd.f32 %v415, %v425
    %428 = vst [vmem:[#allocation2] sm:$0x3] %v427
    // Predicated region
    $region34: #{tpu_custom_call.1} parent=1 // pred_check
      _
    $region35: #{tpu_custom_call.1} parent=1 // pred_check_branch
      %430 = sbr.rel (0) target = $region37
    $region36: #{tpu_custom_call.1} parent=1 // pred_region
      %s432 = ssub.s32 32, 32
      %433 = vsyncadd [#allocation3], %s432
      %s435 = sshll.u32 [#allocation2], 4
      %s436 = int_to_ptr.vmem [resolvable:$true] %s435
      %438 = dma.vmem_to_hbm [thread:$0]  %s436, 32, %s8, [#allocation3]
    $region37: #{tpu_custom_call.1} parent=1 // pred_fallthru
      _
    // Predicated region
    $region38: #{tpu_custom_call.1} parent=1 // pred_check
      _
    $region39: #{tpu_custom_call.1} parent=1 // pred_check_branch
      %440 = sbr.rel (0) target = $region41
    $region40: #{tpu_custom_call.1} parent=1 // pred_region
      %441 = dma.done [#allocation3], 32
    $region41: #{tpu_custom_call.1} parent=1 // pred_fallthru
      _
    %442 = vsyncpa [#allocation3], 1

</llo_original>
